<compile_context>
chip_gen: v7x
topology: tpu7x:2x2x1
jax: 0.10.0
libtpu: 0.0.40
codegen_flags: <defaults>
</compile_context>

<pallas_src>
import jax
import jax.numpy as jnp
from jax.experimental import pallas as pl
from jax.experimental.pallas import tpu as pltpu


def _round_up(x, m):
    return ((x + m - 1) // m) * m


def _tpu_vmem_budget():
    """(per-TensorCore VMEM budget bytes, batch-tile cap) for this generation."""
    try:
        kind = jax.devices()[0].device_kind.lower()
    except Exception:  # pragma: no cover - defensive
        kind = ""
    if "v7" in kind:
        # 64 MiB per TC on v7x; leave headroom for compiler internal scratch.
        return int(64 * 2**20 * 0.85), 256
    # v4/v5e/v5p/v6e: 128 MiB VMEM per TensorCore.
    return int(128 * 2**20 * 0.85), 1024


def fc3_kernel(x_ref,
               w1_ref, s1_ref,
               w2_ref, s2_ref,
               w3_ref, s3_ref,
               o_ref):
    # Stack 1: Linear + folded BN (scale already in the weights; Dropout=id).
    h = jnp.dot(x_ref[...].astype(w1_ref.dtype), w1_ref[...],
                preferred_element_type=jnp.float32)
    h = h + s1_ref[...]                     # (1, n1) f32 shift, broadcast add
    # Stack 2
    h = jnp.dot(h.astype(w2_ref.dtype), w2_ref[...],
                preferred_element_type=jnp.float32)
    h = h + s2_ref[...]
    # Stack 3
    h = jnp.dot(h.astype(w3_ref.dtype), w3_ref[...],
                preferred_element_type=jnp.float32)
    h = h + s3_ref[...]
    # Lane-dense output slab: o_ref may be the (TB*n3/128, 128) reshaped view.
    if tuple(h.shape) != tuple(o_ref.shape):
        h = h.reshape(o_ref.shape)
    o_ref[...] = h.astype(o_ref.dtype)


def make_fc3_params(key, n_input, compute_dtype=jnp.bfloat16):
    """Deterministic parameters matching the torch module's shapes.

    Returns [(w_folded, shift), ...] per stack where
      w_folded : (din, dout) in `compute_dtype`, Linear weight with the BN
                 scale folded into its columns,
      shift    : (1, dout) f32, folded Linear bias + BN mean/beta.
    """
    dims = [(n_input, n_input),
            (n_input, n_input // 2),
            (n_input // 2, n_input // 8)]
    eps = 1e-5
    params = []
    for din, dout in dims:
        key, kw, kb, kg, kbe, km, kv = jax.random.split(key, 7)
        bound = 1.0 / jnp.sqrt(jnp.float32(din))
        # Linear: weight (dout, din), bias (dout,)  [torch convention]
        w = jax.random.uniform(kw, (dout, din), jnp.float32, -bound, bound)
        b = jax.random.uniform(kb, (dout,), jnp.float32, -bound, bound)
        # BatchNorm1d(dout) running stats + affine
        gamma = 1.0 + 0.1 * jax.random.normal(kg, (dout,), jnp.float32)
        beta = 0.1 * jax.random.normal(kbe, (dout,), jnp.float32)
        rmean = 0.1 * jax.random.normal(km, (dout,), jnp.float32)
        rvar = 1.0 + 0.1 * jax.random.uniform(kv, (dout,), jnp.float32)
        #   y = (x @ w.T + b - rmean) / sqrt(rvar+eps) * gamma + beta
        #     = x @ (w.T * scale) + shift
        scale = gamma / jnp.sqrt(rvar + eps)
        shift = (b - rmean) * scale + beta
        w_folded = (w.T * scale[None, :]).astype(compute_dtype)   # (din, dout)
        params.append((w_folded, shift[None, :].astype(jnp.float32)))
    return params


def _fc3_call(x_pad, params, TB, *, single_buffer_weights, lane_dense,
              vmem_limit, out_dtype):
    (w1, s1), (w2, s2), (w3, s3) = params
    B_pad, n_in = x_pad.shape
    n1, n2, n3 = w1.shape[1], w2.shape[1], w3.shape[1]

    grid = (B_pad // TB,)
    row_map = lambda i: (i, 0)      # batch-tiled operands
    const_map = lambda i: (0, 0)    # weights/shifts: VMEM-resident across steps

    # Constant-index blocks never re-fetch; single-buffer them to halve their
    # VMEM residency (important per-TC on v7x; free saving elsewhere).
    wkw = dict(pipeline_mode=pl.Buffered(1)) if single_buffer_weights else {}

    in_specs = [
        pl.BlockSpec((TB, n_in), row_map),
        pl.BlockSpec((n_in, n1), const_map, **wkw),
        pl.BlockSpec((1, n1), const_map, **wkw),
        pl.BlockSpec((n1, n2), const_map, **wkw),
        pl.BlockSpec((1, n2), const_map, **wkw),
        pl.BlockSpec((n2, n3), const_map, **wkw),
        pl.BlockSpec((1, n3), const_map, **wkw),
    ]

    if lane_dense:
        # Present a 128-lane-dense output slab: (B_pad, n3) -> (B_pad*n3/128, 128)
        out_rows_per_tile = TB * n3 // 128
        out_shape = jax.ShapeDtypeStruct((B_pad * n3 // 128, 128), out_dtype)
        out_spec = pl.BlockSpec((out_rows_per_tile, 128), row_map)
    else:
        out_shape = jax.ShapeDtypeStruct((B_pad, n3), out_dtype)
        out_spec = pl.BlockSpec((TB, n3), row_map)

    flops = 2 * B_pad * (n_in * n1 + n1 * n2 + n2 * n3)
    param_bytes = sum(int(a.size) * a.dtype.itemsize for p in params for a in p)
    bytes_accessed = (int(x_pad.size) * x_pad.dtype.itemsize + param_bytes
                      + B_pad * n3 * jnp.dtype(out_dtype).itemsize)

    out = pl.pallas_call(
        fc3_kernel,
        out_shape=out_shape,
        grid_spec=pltpu.PrefetchScalarGridSpec(
            num_scalar_prefetch=0,
            grid=grid,
            in_specs=in_specs,
            out_specs=out_spec,
        ),
        compiler_params=pltpu.CompilerParams(
            dimension_semantics=("parallel",),   # batch axis shards across TCs
            vmem_limit_bytes=int(vmem_limit),
        ),
        cost_estimate=pl.CostEstimate(
            flops=flops, transcendentals=0, bytes_accessed=int(bytes_accessed)),
    )(x_pad, w1, s1, w2, s2, w3, s3)

    if lane_dense:
        out = out.reshape(B_pad, n3)   # undo the lane-dense slab in the wrapper
    return out


def fc3_forward(x, params, block_b=None):
    """Fused FC3 forward. x: (B, n_input) f32."""
    (w1, s1), (w2, s2), (w3, s3) = params
    B, n_in = x.shape
    n1, n2, n3 = w1.shape[1], w2.shape[1], w3.shape[1]
    out_dtype = x.dtype

    vmem_budget, tb_cap = _tpu_vmem_budget()

    # Per-TensorCore VMEM plan (megacore duplicates weight residency per TC):
    # resident weights + shifts, double-buffered f32 x/out tiles, and the live
    # f32/bf16 intermediates, with 25% slack.
    param_bytes = sum(int(a.size) * a.dtype.itemsize for p in params for a in p)
    row_bytes = 8 * n_in + 8 * n3 + 6 * (n1 + n2) + 4 * n3
    avail = vmem_budget - 2 * param_bytes   # 2x: stays safe under the fallback
    if avail <= 0:
        avail = vmem_budget // 4            # see TODO: K/N-tiled fallback plan
    tb_budget = max(16, int(avail / (1.25 * row_bytes)))

    TB = min(tb_cap, tb_budget, _round_up(B, 16))
    if block_b is not None:
        TB = min(TB, block_b)
    TB = max(16, (TB // 16) * 16)           # bf16 sublane packing: multiple of 16

    B_pad = _round_up(B, TB)
    # Pad only in the ragged case; x itself is never dtype-converted here
    # (the bf16 cast happens inside the kernel, hidden under the MXU).
    x_pad = x if B_pad == B else jnp.pad(x, ((0, B_pad - B), (0, 0)))

    # Lane-dense output slab only when it maps onto full (8,128) tiles.
    lane_dense = (n3 < 128) and ((TB * n3) % 1024 == 0)

    try:
        out = _fc3_call(x_pad, params, TB,
                        single_buffer_weights=True, lane_dense=lane_dense,
                        vmem_limit=vmem_budget, out_dtype=out_dtype)
        out = jax.block_until_ready(out)
    except Exception:
        # Conservative fallback: default double-buffering, natural (TB, n3)
        # output layout (previously validated configuration).
        out = _fc3_call(x_pad, params, TB,
                        single_buffer_weights=False, lane_dense=False,
                        vmem_limit=vmem_budget, out_dtype=out_dtype)

    return out[:B] if B_pad != B else out


def fc3_reference(x, params):
    """Pure-JAX reference with identical folding and bf16/f32 numerics."""
    h = x
    for w, s in params:
        h = jnp.dot(h.astype(jnp.bfloat16), w,
                    preferred_element_type=jnp.float32) + s
    return h.astype(x.dtype)


if __name__ == "__main__":
    key = jax.random.PRNGKey(0)
    k_x, k_p = jax.random.split(key)

    n_input = 64          # -> layer widths 64, 32, 8
    batch = 200           # not a multiple of the batch tile -> ragged tail
    x = jax.random.normal(k_x, (batch, n_input), jnp.float32)

    params = make_fc3_params(k_p, n_input)

    # block_b=128 gives multiple grid steps, a padded tail, and (with n3=8)
    # exercises the lane-dense output slab path (128*8 = 1024 = 8*128).
    out = fc3_forward(x, params, block_b=128)
    out = jax.block_until_ready(out)

    ref = fc3_reference(x, params)
    assert out.shape == (batch, n_input // 8), out.shape
    assert jnp.allclose(out, ref, atol=2e-2, rtol=2e-2), "mismatch vs reference"

    print("KERNEL_OK")
</pallas_src>

<mosaic_0001>
module attributes {stable_mosaic.version = 11 : i64} {
  func.func @fc3_kernel(%arg0: i32, %arg1: memref<128x64xf32, #tpu.memory_space<vmem>>, %arg2: memref<64x64xbf16, #tpu.memory_space<vmem>>, %arg3: memref<1x64xf32, #tpu.memory_space<vmem>>, %arg4: memref<64x32xbf16, #tpu.memory_space<vmem>>, %arg5: memref<1x32xf32, #tpu.memory_space<vmem>>, %arg6: memref<32x8xbf16, #tpu.memory_space<vmem>>, %arg7: memref<1x8xf32, #tpu.memory_space<vmem>>, %arg8: memref<8x128xf32, #tpu.memory_space<vmem>>) attributes {dimension_semantics = [#tpu.dimension_semantics<parallel>], iteration_bounds = array<i64: 2>, scalar_prefetch = 0 : i64, scratch_operands = 0 : i64, tpu.core_type = #tpu.core_type<tc>, window_params = [{transform_indices = @transform_0, window_bounds = array<i64: 128, 64>}, {pipeline_mode = #tpu.pipeline_mode<synchronous>, transform_indices = @transform_1, window_bounds = array<i64: 64, 64>}, {pipeline_mode = #tpu.pipeline_mode<synchronous>, transform_indices = @transform_2, window_bounds = array<i64: 1, 64>}, {pipeline_mode = #tpu.pipeline_mode<synchronous>, transform_indices = @transform_3, window_bounds = array<i64: 64, 32>}, {pipeline_mode = #tpu.pipeline_mode<synchronous>, transform_indices = @transform_4, window_bounds = array<i64: 1, 32>}, {pipeline_mode = #tpu.pipeline_mode<synchronous>, transform_indices = @transform_5, window_bounds = array<i64: 32, 8>}, {pipeline_mode = #tpu.pipeline_mode<synchronous>, transform_indices = @transform_6, window_bounds = array<i64: 1, 8>}, {transform_indices = @transform_7, window_bounds = array<i64: 8, 128>}]} {
    %c0 = arith.constant 0 : index
    %c0_0 = arith.constant 0 : index
    %0 = vector.load %arg1[%c0, %c0_0] : memref<128x64xf32, #tpu.memory_space<vmem>>, vector<128x64xf32>
    %1 = arith.truncf %0 : vector<128x64xf32> to vector<128x64xbf16>
    %c0_1 = arith.constant 0 : index
    %c0_2 = arith.constant 0 : index
    %2 = vector.load %arg2[%c0_1, %c0_2] : memref<64x64xbf16, #tpu.memory_space<vmem>>, vector<64x64xbf16>
    %cst = arith.constant dense<0.000000e+00> : vector<128x64xf32>
    %3 = tpu.matmul %1, %2, %cst {dimension_numbers = #tpu.dot_dimension_numbers<[1], [0], [0], [1], [0, 0, 1, 1], [], []>} : vector<128x64xbf16>, vector<64x64xbf16>, vector<128x64xf32> -> vector<128x64xf32>
    %c0_3 = arith.constant 0 : index
    %c0_4 = arith.constant 0 : index
    %4 = vector.load %arg3[%c0_3, %c0_4] : memref<1x64xf32, #tpu.memory_space<vmem>>, vector<1x64xf32>
    %5 = vector.broadcast %4 : vector<1x64xf32> to vector<128x64xf32>
    %6 = arith.addf %3, %5 : vector<128x64xf32>
    %7 = arith.truncf %6 : vector<128x64xf32> to vector<128x64xbf16>
    %c0_5 = arith.constant 0 : index
    %c0_6 = arith.constant 0 : index
    %8 = vector.load %arg4[%c0_5, %c0_6] : memref<64x32xbf16, #tpu.memory_space<vmem>>, vector<64x32xbf16>
    %cst_7 = arith.constant dense<0.000000e+00> : vector<128x32xf32>
    %9 = tpu.matmul %7, %8, %cst_7 {dimension_numbers = #tpu.dot_dimension_numbers<[1], [0], [0], [1], [0, 0, 1, 1], [], []>} : vector<128x64xbf16>, vector<64x32xbf16>, vector<128x32xf32> -> vector<128x32xf32>
    %c0_8 = arith.constant 0 : index
    %c0_9 = arith.constant 0 : index
    %10 = vector.load %arg5[%c0_8, %c0_9] : memref<1x32xf32, #tpu.memory_space<vmem>>, vector<1x32xf32>
    %11 = vector.broadcast %10 : vector<1x32xf32> to vector<128x32xf32>
    %12 = arith.addf %9, %11 : vector<128x32xf32>
    %13 = arith.truncf %12 : vector<128x32xf32> to vector<128x32xbf16>
    %c0_10 = arith.constant 0 : index
    %c0_11 = arith.constant 0 : index
    %14 = vector.load %arg6[%c0_10, %c0_11] : memref<32x8xbf16, #tpu.memory_space<vmem>>, vector<32x8xbf16>
    %cst_12 = arith.constant dense<0.000000e+00> : vector<128x8xf32>
    %15 = tpu.matmul %13, %14, %cst_12 {dimension_numbers = #tpu.dot_dimension_numbers<[1], [0], [0], [1], [0, 0, 1, 1], [], []>} : vector<128x32xbf16>, vector<32x8xbf16>, vector<128x8xf32> -> vector<128x8xf32>
    %c0_13 = arith.constant 0 : index
    %c0_14 = arith.constant 0 : index
    %16 = vector.load %arg7[%c0_13, %c0_14] : memref<1x8xf32, #tpu.memory_space<vmem>>, vector<1x8xf32>
    %17 = vector.broadcast %16 : vector<1x8xf32> to vector<128x8xf32>
    %18 = arith.addf %15, %17 : vector<128x8xf32>
    %19 = vector.shape_cast %18 : vector<128x8xf32> to vector<8x128xf32>
    %c0_15 = arith.constant 0 : index
    %c0_16 = arith.constant 0 : index
    %20 = vector.load %arg8[%c0_15, %c0_16] : memref<8x128xf32, #tpu.memory_space<vmem>>, vector<8x128xf32>
    tpu.vector_store %arg8[%c0_15, %c0_16], %19 {strides = array<i32>} : memref<8x128xf32, #tpu.memory_space<vmem>>, vector<8x128xf32>,
    return
  }
  func.func @transform_0(%arg0: i32) -> (i32, i32) {
    %c0_i32 = arith.constant 0 : i32
    %c0_i32_0 = arith.constant 0 : i32
    return %arg0, %c0_i32 : i32, i32
  }
  func.func @transform_1(%arg0: i32) -> (i32, i32) {
    %c0_i32 = arith.constant 0 : i32
    %c0_i32_0 = arith.constant 0 : i32
    %c0_i32_1 = arith.constant 0 : i32
    return %c0_i32, %c0_i32_0 : i32, i32
  }
  func.func @transform_2(%arg0: i32) -> (i32, i32) {
    %c0_i32 = arith.constant 0 : i32
    %c0_i32_0 = arith.constant 0 : i32
    %c0_i32_1 = arith.constant 0 : i32
    return %c0_i32, %c0_i32_0 : i32, i32
  }
  func.func @transform_3(%arg0: i32) -> (i32, i32) {
    %c0_i32 = arith.constant 0 : i32
    %c0_i32_0 = arith.constant 0 : i32
    %c0_i32_1 = arith.constant 0 : i32
    return %c0_i32, %c0_i32_0 : i32, i32
  }
  func.func @transform_4(%arg0: i32) -> (i32, i32) {
    %c0_i32 = arith.constant 0 : i32
    %c0_i32_0 = arith.constant 0 : i32
    %c0_i32_1 = arith.constant 0 : i32
    return %c0_i32, %c0_i32_0 : i32, i32
  }
  func.func @transform_5(%arg0: i32) -> (i32, i32) {
    %c0_i32 = arith.constant 0 : i32
    %c0_i32_0 = arith.constant 0 : i32
    %c0_i32_1 = arith.constant 0 : i32
    return %c0_i32, %c0_i32_0 : i32, i32
  }
  func.func @transform_6(%arg0: i32) -> (i32, i32) {
    %c0_i32 = arith.constant 0 : i32
    %c0_i32_0 = arith.constant 0 : i32
    %c0_i32_1 = arith.constant 0 : i32
    return %c0_i32, %c0_i32_0 : i32, i32
  }
  func.func @transform_7(%arg0: i32) -> (i32, i32) {
    %c0_i32 = arith.constant 0 : i32
    %c0_i32_0 = arith.constant 0 : i32
    return %arg0, %c0_i32 : i32, i32
  }
}

module attributes {stable_mosaic.version = 11 : i64} {
  func.func @fc3_kernel(%arg0: i32, %arg1: memref<128x64xf32, #tpu.memory_space<vmem>>, %arg2: memref<64x64xbf16, #tpu.memory_space<vmem>>, %arg3: memref<1x64xf32, #tpu.memory_space<vmem>>, %arg4: memref<64x32xbf16, #tpu.memory_space<vmem>>, %arg5: memref<1x32xf32, #tpu.memory_space<vmem>>, %arg6: memref<32x8xbf16, #tpu.memory_space<vmem>>, %arg7: memref<1x8xf32, #tpu.memory_space<vmem>>, %arg8: memref<128x8xf32, #tpu.memory_space<vmem>>) attributes {dimension_semantics = [#tpu.dimension_semantics<parallel>], iteration_bounds = array<i64: 2>, scalar_prefetch = 0 : i64, scratch_operands = 0 : i64, tpu.core_type = #tpu.core_type<tc>, window_params = [{transform_indices = @transform_0, window_bounds = array<i64: 128, 64>}, {pipeline_mode = #tpu.pipeline_mode<synchronous>, transform_indices = @transform_1, window_bounds = array<i64: 64, 64>}, {pipeline_mode = #tpu.pipeline_mode<synchronous>, transform_indices = @transform_2, window_bounds = array<i64: 1, 64>}, {pipeline_mode = #tpu.pipeline_mode<synchronous>, transform_indices = @transform_3, window_bounds = array<i64: 64, 32>}, {pipeline_mode = #tpu.pipeline_mode<synchronous>, transform_indices = @transform_4, window_bounds = array<i64: 1, 32>}, {pipeline_mode = #tpu.pipeline_mode<synchronous>, transform_indices = @transform_5, window_bounds = array<i64: 32, 8>}, {pipeline_mode = #tpu.pipeline_mode<synchronous>, transform_indices = @transform_6, window_bounds = array<i64: 1, 8>}, {transform_indices = @transform_7, window_bounds = array<i64: 128, 8>}]} {
    %c0 = arith.constant 0 : index
    %c0_0 = arith.constant 0 : index
    %0 = vector.load %arg1[%c0, %c0_0] : memref<128x64xf32, #tpu.memory_space<vmem>>, vector<128x64xf32>
    %1 = arith.truncf %0 : vector<128x64xf32> to vector<128x64xbf16>
    %c0_1 = arith.constant 0 : index
    %c0_2 = arith.constant 0 : index
    %2 = vector.load %arg2[%c0_1, %c0_2] : memref<64x64xbf16, #tpu.memory_space<vmem>>, vector<64x64xbf16>
    %cst = arith.constant dense<0.000000e+00> : vector<128x64xf32>
    %3 = tpu.matmul %1, %2, %cst {dimension_numbers = #tpu.dot_dimension_numbers<[1], [0], [0], [1], [0, 0, 1, 1], [], []>} : vector<128x64xbf16>, vector<64x64xbf16>, vector<128x64xf32> -> vector<128x64xf32>
    %c0_3 = arith.constant 0 : index
    %c0_4 = arith.constant 0 : index
    %4 = vector.load %arg3[%c0_3, %c0_4] : memref<1x64xf32, #tpu.memory_space<vmem>>, vector<1x64xf32>
    %5 = vector.broadcast %4 : vector<1x64xf32> to vector<128x64xf32>
    %6 = arith.addf %3, %5 : vector<128x64xf32>
    %7 = arith.truncf %6 : vector<128x64xf32> to vector<128x64xbf16>
    %c0_5 = arith.constant 0 : index
    %c0_6 = arith.constant 0 : index
    %8 = vector.load %arg4[%c0_5, %c0_6] : memref<64x32xbf16, #tpu.memory_space<vmem>>, vector<64x32xbf16>
    %cst_7 = arith.constant dense<0.000000e+00> : vector<128x32xf32>
    %9 = tpu.matmul %7, %8, %cst_7 {dimension_numbers = #tpu.dot_dimension_numbers<[1], [0], [0], [1], [0, 0, 1, 1], [], []>} : vector<128x64xbf16>, vector<64x32xbf16>, vector<128x32xf32> -> vector<128x32xf32>
    %c0_8 = arith.constant 0 : index
    %c0_9 = arith.constant 0 : index
    %10 = vector.load %arg5[%c0_8, %c0_9] : memref<1x32xf32, #tpu.memory_space<vmem>>, vector<1x32xf32>
    %11 = vector.broadcast %10 : vector<1x32xf32> to vector<128x32xf32>
    %12 = arith.addf %9, %11 : vector<128x32xf32>
    %13 = arith.truncf %12 : vector<128x32xf32> to vector<128x32xbf16>
    %c0_10 = arith.constant 0 : index
    %c0_11 = arith.constant 0 : index
    %14 = vector.load %arg6[%c0_10, %c0_11] : memref<32x8xbf16, #tpu.memory_space<vmem>>, vector<32x8xbf16>
    %cst_12 = arith.constant dense<0.000000e+00> : vector<128x8xf32>
    %15 = tpu.matmul %13, %14, %cst_12 {dimension_numbers = #tpu.dot_dimension_numbers<[1], [0], [0], [1], [0, 0, 1, 1], [], []>} : vector<128x32xbf16>, vector<32x8xbf16>, vector<128x8xf32> -> vector<128x8xf32>
    %c0_13 = arith.constant 0 : index
    %c0_14 = arith.constant 0 : index
    %16 = vector.load %arg7[%c0_13, %c0_14] : memref<1x8xf32, #tpu.memory_space<vmem>>, vector<1x8xf32>
    %17 = vector.broadcast %16 : vector<1x8xf32> to vector<128x8xf32>
    %18 = arith.addf %15, %17 : vector<128x8xf32>
    %c0_15 = arith.constant 0 : index
    %c0_16 = arith.constant 0 : index
    %19 = vector.load %arg8[%c0_15, %c0_16] : memref<128x8xf32, #tpu.memory_space<vmem>>, vector<128x8xf32>
    tpu.vector_store %arg8[%c0_15, %c0_16], %18 {strides = array<i32>} : memref<128x8xf32, #tpu.memory_space<vmem>>, vector<128x8xf32>,
    return
  }
  func.func @transform_0(%arg0: i32) -> (i32, i32) {
    %c0_i32 = arith.constant 0 : i32
    %c0_i32_0 = arith.constant 0 : i32
    return %arg0, %c0_i32 : i32, i32
  }
  func.func @transform_1(%arg0: i32) -> (i32, i32) {
    %c0_i32 = arith.constant 0 : i32
    %c0_i32_0 = arith.constant 0 : i32
    %c0_i32_1 = arith.constant 0 : i32
    return %c0_i32, %c0_i32_0 : i32, i32
  }
  func.func @transform_2(%arg0: i32) -> (i32, i32) {
    %c0_i32 = arith.constant 0 : i32
    %c0_i32_0 = arith.constant 0 : i32
    %c0_i32_1 = arith.constant 0 : i32
    return %c0_i32, %c0_i32_0 : i32, i32
  }
  func.func @transform_3(%arg0: i32) -> (i32, i32) {
    %c0_i32 = arith.constant 0 : i32
    %c0_i32_0 = arith.constant 0 : i32
    %c0_i32_1 = arith.constant 0 : i32
    return %c0_i32, %c0_i32_0 : i32, i32
  }
  func.func @transform_4(%arg0: i32) -> (i32, i32) {
    %c0_i32 = arith.constant 0 : i32
    %c0_i32_0 = arith.constant 0 : i32
    %c0_i32_1 = arith.constant 0 : i32
    return %c0_i32, %c0_i32_0 : i32, i32
  }
  func.func @transform_5(%arg0: i32) -> (i32, i32) {
    %c0_i32 = arith.constant 0 : i32
    %c0_i32_0 = arith.constant 0 : i32
    %c0_i32_1 = arith.constant 0 : i32
    return %c0_i32, %c0_i32_0 : i32, i32
  }
  func.func @transform_6(%arg0: i32) -> (i32, i32) {
    %c0_i32 = arith.constant 0 : i32
    %c0_i32_0 = arith.constant 0 : i32
    %c0_i32_1 = arith.constant 0 : i32
    return %c0_i32, %c0_i32_0 : i32, i32
  }
  func.func @transform_7(%arg0: i32) -> (i32, i32) {
    %c0_i32 = arith.constant 0 : i32
    %c0_i32_0 = arith.constant 0 : i32
    return %arg0, %c0_i32 : i32, i32
  }
}

</mosaic_0001>

<llo_original>
// kernel: tpu_custom_call.1
$region0: #{tpu_custom_call.1}
  #allocation0 [shape = 'u32[]', space=smem, size = 0x4, offset = 0x4, fixed_abs, tag = 'smem constant byte address 0x4 - core index']
  #allocation1 [shape = 'u32[144,128]{1,0:T(1,128)}', space=vmem, size = 0x12000, scoped, tag = 'internal scratch']
  %s0 = inlined_call_operand.hbm [shape: f32[256,64], index: 0, kind: input, shape index: {}]
  %s1 = inlined_call_operand.hbm [shape: bf16[64,64], index: 1, kind: input, shape index: {}]
  %s2 = inlined_call_operand.hbm [shape: f32[1,64], index: 2, kind: input, shape index: {}]
  %s3 = inlined_call_operand.hbm [shape: bf16[64,32], index: 3, kind: input, shape index: {}]
  %s4 = inlined_call_operand.hbm [shape: f32[1,32], index: 4, kind: input, shape index: {}]
  %s5 = inlined_call_operand.hbm [shape: bf16[32,8], index: 5, kind: input, shape index: {}]
  %s6 = inlined_call_operand.hbm [shape: f32[1,8], index: 6, kind: input, shape index: {}]
  %s7 = inlined_call_operand.hbm [shape: f32[256,8], index: 7, kind: output, shape index: {}]
  %s8 = sld [smem:[#allocation0]]
  $region89: #{tpu_custom_call.1} parent=0
    _
  %s10 = ssub.s32 1, %s8
  %s11 = scalar_select 0, %s10, %s8
  $region1: #{tpu_custom_call.1} parent=0
    #allocation2 [shape = 'u8[131072]{0}', space=vmem, size = 0x20000, scoped, tag = 'input window, operand 0']
    #allocation3 [shape = 's32[2]{0}', space=sflag, size = 0x8, scoped, tag = 'scoped memory for tpu_custom_call.1']
    #allocation4 [shape = 's32[2]{0}', space=sflag, size = 0x8, scoped, tag = 'scoped memory for tpu_custom_call.1']
    #allocation5 [shape = 'u8[16384]{0}', space=vmem, size = 0x4000, scoped, tag = 'input window, operand 1, single buffered']
    #allocation6 [shape = 's32[1]{0}', space=sflag, size = 0x4, scoped, tag = 'scoped memory for tpu_custom_call.1']
    #allocation7 [shape = 'u8[512]{0}', space=vmem, size = 0x400, scoped, tag = 'input window, operand 2, single buffered']
    #allocation8 [shape = 'u8[16384]{0}', space=vmem, size = 0x4000, scoped, tag = 'input window, operand 3, single buffered']
    #allocation9 [shape = 's32[1]{0}', space=sflag, size = 0x4, scoped, tag = 'scoped memory for tpu_custom_call.1']
    #allocation10 [shape = 'u8[512]{0}', space=vmem, size = 0x400, scoped, tag = 'input window, operand 4, single buffered']
    #allocation11 [shape = 'u8[8192]{0}', space=vmem, size = 0x2000, scoped, tag = 'input window, operand 5, single buffered']
    #allocation12 [shape = 's32[1]{0}', space=sflag, size = 0x4, scoped, tag = 'scoped memory for tpu_custom_call.1']
    #allocation13 [shape = 'u8[512]{0}', space=vmem, size = 0x400, scoped, tag = 'input window, operand 6, single buffered']
    #allocation14 [shape = 'u8[131072]{0}', space=vmem, size = 0x20000, scoped, tag = 'output window, operand 0']
    %12 = vsyncpa [#allocation3], 0
    %s13 = scalar_lea.sflag [#allocation3], 1
    %14 = vsyncpa %s13, 0
    %15 = vsyncpa [#allocation6], 0
    %16 = vsyncpa [#allocation9], 0
    %17 = vsyncpa [#allocation12], 0
    %18 = vsyncpa [#allocation4], 0
    %s19 = scalar_lea.sflag [#allocation4], 1
    %20 = vsyncpa %s19, 0
    loop: start=0, step=1, limit=4
    $region2: #{tpu_custom_call.1} parent=1 // loop_pre_header
      _
    $region3: #{tpu_custom_call.1} parent=1 // loop_header
      %s22 = sphi 0, %s26
      %p23 = scmp.ge.s32.totalorder %s22, 4
      %s32 = sphi 0, %s34
      %s35 = sphi 0, %s32
      %s36 = sphi 0, %s35
      %s52 = sphi 0, %s36
      %s56 = sphi 0, %s56
      %s58 = sphi 0, %s56
      %s59 = sphi 0, %s58
      %s73 = sphi 0, %s59
      %s77 = sphi 0, %s77
      %s79 = sphi 0, %s77
      %s80 = sphi 0, %s79
      %s94 = sphi 0, %s80
      %s98 = sphi 0, %s98
      %s100 = sphi 0, %s98
      %s101 = sphi 0, %s100
      %s115 = sphi 0, %s101
      %s119 = sphi 0, %s119
      %s121 = sphi 0, %s119
      %s122 = sphi 0, %s121
      %s136 = sphi 0, %s122
      %s140 = sphi 0, %s140
      %s142 = sphi 0, %s140
      %s143 = sphi 0, %s142
      %s157 = sphi 0, %s143
      %s161 = sphi 0, %s161
      %s163 = sphi 0, %s161
      %s164 = sphi 0, %s163
      %s178 = sphi 0, %s164
      %s184 = sphi 0, %s186
      %s187 = sphi 0, %s184
      %s188 = sphi 0, %s187
      %s204 = sphi 0, %s188
    $region4: #{tpu_custom_call.1} parent=1 // loop_header_branch
      %25 = sbr.rel (%p23) target = $region8
    $region5: #{tpu_custom_call.1} parent=1 // loop_body
      %s27 = ssub.s32 %s22, 1
      %s28 = ssub.s32 %s22, 2
      %s29 = sadd.s32 %s22, 1
      %s30 = ssub.s32 %s22, %s29
      %p31 = scmp.eq.s32.totalorder %s30, 0
      %s33 = sadd.s32 %s32, 1
      %s34 = scalar_select %p31, %s32, %s33
      %p37 = pneg %p31
      %p38 = scmp.eq.s32.totalorder %s22, 1
      %p39 = por %p37, %p38
      %p40 = scmp.ne.s32.totalorder %s32, %s35
      %p41 = scmp.eq.s32.totalorder %s22, 0
      %p42 = por %p40, %p41
      %p43 = scmp.ne.s32.totalorder %s32, %s35
      %p44 = scmp.eq.s32.totalorder %s27, 1
      %p45 = por %p43, %p44
      %p46 = scmp.ne.s32.totalorder %s35, %s36
      %p47 = scmp.eq.s32.totalorder %s27, 0
      %p48 = por %p46, %p47
      %p49 = scmp.ne.s32.totalorder %s35, %s36
      %p50 = scmp.eq.s32.totalorder %s28, 1
      %p51 = por %p49, %p50
      %p53 = scmp.ne.s32.totalorder %s36, %s52
      %p54 = scmp.eq.s32.totalorder %s28, 0
      %p55 = por %p53, %p54
      %s57 = sadd.s32 %s56, 1
      %p60 = scmp.eq.s32.totalorder %s22, 1
      %p61 = scmp.ne.s32.totalorder %s56, %s58
      %p62 = scmp.eq.s32.totalorder %s22, 0
      %p63 = por %p61, %p62
      %p64 = scmp.ne.s32.totalorder %s56, %s58
      %p65 = scmp.eq.s32.totalorder %s27, 1
      %p66 = por %p64, %p65
      %p67 = scmp.ne.s32.totalorder %s58, %s59
      %p68 = scmp.eq.s32.totalorder %s27, 0
      %p69 = por %p67, %p68
      %p70 = scmp.ne.s32.totalorder %s58, %s59
      %p71 = scmp.eq.s32.totalorder %s28, 1
      %p72 = por %p70, %p71
      %p74 = scmp.ne.s32.totalorder %s59, %s73
      %p75 = scmp.eq.s32.totalorder %s28, 0
      %p76 = por %p74, %p75
      %s78 = sadd.s32 %s77, 1
      %p81 = scmp.eq.s32.totalorder %s22, 1
      %p82 = scmp.ne.s32.totalorder %s77, %s79
      %p83 = scmp.eq.s32.totalorder %s22, 0
      %p84 = por %p82, %p83
      %p85 = scmp.ne.s32.totalorder %s77, %s79
      %p86 = scmp.eq.s32.totalorder %s27, 1
      %p87 = por %p85, %p86
      %p88 = scmp.ne.s32.totalorder %s79, %s80
      %p89 = scmp.eq.s32.totalorder %s27, 0
      %p90 = por %p88, %p89
      %p91 = scmp.ne.s32.totalorder %s79, %s80
      %p92 = scmp.eq.s32.totalorder %s28, 1
      %p93 = por %p91, %p92
      %p95 = scmp.ne.s32.totalorder %s80, %s94
      %p96 = scmp.eq.s32.totalorder %s28, 0
      %p97 = por %p95, %p96
      %s99 = sadd.s32 %s98, 1
      %p102 = scmp.eq.s32.totalorder %s22, 1
      %p103 = scmp.ne.s32.totalorder %s98, %s100
      %p104 = scmp.eq.s32.totalorder %s22, 0
      %p105 = por %p103, %p104
      %p106 = scmp.ne.s32.totalorder %s98, %s100
      %p107 = scmp.eq.s32.totalorder %s27, 1
      %p108 = por %p106, %p107
      %p109 = scmp.ne.s32.totalorder %s100, %s101
      %p110 = scmp.eq.s32.totalorder %s27, 0
      %p111 = por %p109, %p110
      %p112 = scmp.ne.s32.totalorder %s100, %s101
      %p113 = scmp.eq.s32.totalorder %s28, 1
      %p114 = por %p112, %p113
      %p116 = scmp.ne.s32.totalorder %s101, %s115
      %p117 = scmp.eq.s32.totalorder %s28, 0
      %p118 = por %p116, %p117
      %s120 = sadd.s32 %s119, 1
      %p123 = scmp.eq.s32.totalorder %s22, 1
      %p124 = scmp.ne.s32.totalorder %s119, %s121
      %p125 = scmp.eq.s32.totalorder %s22, 0
      %p126 = por %p124, %p125
      %p127 = scmp.ne.s32.totalorder %s119, %s121
      %p128 = scmp.eq.s32.totalorder %s27, 1
      %p129 = por %p127, %p128
      %p130 = scmp.ne.s32.totalorder %s121, %s122
      %p131 = scmp.eq.s32.totalorder %s27, 0
      %p132 = por %p130, %p131
      %p133 = scmp.ne.s32.totalorder %s121, %s122
      %p134 = scmp.eq.s32.totalorder %s28, 1
      %p135 = por %p133, %p134
      %p137 = scmp.ne.s32.totalorder %s122, %s136
      %p138 = scmp.eq.s32.totalorder %s28, 0
      %p139 = por %p137, %p138
      %s141 = sadd.s32 %s140, 1
      %p144 = scmp.eq.s32.totalorder %s22, 1
      %p145 = scmp.ne.s32.totalorder %s140, %s142
      %p146 = scmp.eq.s32.totalorder %s22, 0
      %p147 = por %p145, %p146
      %p148 = scmp.ne.s32.totalorder %s140, %s142
      %p149 = scmp.eq.s32.totalorder %s27, 1
      %p150 = por %p148, %p149
      %p151 = scmp.ne.s32.totalorder %s142, %s143
      %p152 = scmp.eq.s32.totalorder %s27, 0
      %p153 = por %p151, %p152
      %p154 = scmp.ne.s32.totalorder %s142, %s143
      %p155 = scmp.eq.s32.totalorder %s28, 1
      %p156 = por %p154, %p155
      %p158 = scmp.ne.s32.totalorder %s143, %s157
      %p159 = scmp.eq.s32.totalorder %s28, 0
      %p160 = por %p158, %p159
      %s162 = sadd.s32 %s161, 1
      %p165 = scmp.eq.s32.totalorder %s22, 1
      %p166 = scmp.ne.s32.totalorder %s161, %s163
      %p167 = scmp.eq.s32.totalorder %s22, 0
      %p168 = por %p166, %p167
      %p169 = scmp.ne.s32.totalorder %s161, %s163
      %p170 = scmp.eq.s32.totalorder %s27, 1
      %p171 = por %p169, %p170
      %p172 = scmp.ne.s32.totalorder %s163, %s164
      %p173 = scmp.eq.s32.totalorder %s27, 0
      %p174 = por %p172, %p173
      %p175 = scmp.ne.s32.totalorder %s163, %s164
      %p176 = scmp.eq.s32.totalorder %s28, 1
      %p177 = por %p175, %p176
      %p179 = scmp.ne.s32.totalorder %s164, %s178
      %p180 = scmp.eq.s32.totalorder %s28, 0
      %p181 = por %p179, %p180
      %s182 = ssub.s32 %s22, %s29
      %p183 = scmp.eq.s32.totalorder %s182, 0
      %s185 = sadd.s32 %s184, 1
      %s186 = scalar_select %p183, %s184, %s185
      %p189 = pneg %p183
      %p190 = scmp.eq.s32.totalorder %s22, 1
      %p191 = por %p189, %p190
      %p192 = scmp.ne.s32.totalorder %s184, %s187
      %p193 = scmp.eq.s32.totalorder %s22, 0
      %p194 = por %p192, %p193
      %p195 = scmp.ne.s32.totalorder %s184, %s187
      %p196 = scmp.eq.s32.totalorder %s27, 1
      %p197 = por %p195, %p196
      %p198 = scmp.ne.s32.totalorder %s187, %s188
      %p199 = scmp.eq.s32.totalorder %s27, 0
      %p200 = por %p198, %p199
      %p201 = scmp.ne.s32.totalorder %s187, %s188
      %p202 = scmp.eq.s32.totalorder %s28, 1
      %p203 = por %p201, %p202
      %p205 = scmp.ne.s32.totalorder %s188, %s204
      %p206 = scmp.eq.s32.totalorder %s28, 0
      %p207 = por %p205, %p206
      %p208 = scmp.le.s32.totalorder 1, %s22
      %p209 = scmp.lt.s32.totalorder %s22, 3
      %p210 = pnand %p208, %p209
      %p211 = pneg %p210
      // Predicated region
      $region9: #{tpu_custom_call.1} parent=5 // pred_check
        _
      $region10: #{tpu_custom_call.1} parent=5 // pred_check_branch
        %213 = sbr.rel (%p210) target = $region12
      $region11: #{tpu_custom_call.1} parent=5 // pred_region
        %s214 = ssub.s32 %s22, 1
        // Predicated region
        $region13: #{tpu_custom_call.1} parent=11 // pred_check
          %p215 = pneg %p69
        $region14: #{tpu_custom_call.1} parent=11 // pred_check_branch
          %217 = sbr.rel (%p215) target = $region16
        $region15: #{tpu_custom_call.1} parent=11 // pred_region
          %s219 = ssub.s32 512, 512
          %220 = vsyncadd [#allocation6], %s219
          %s221 = sshll.u32 [#allocation5], 4
          %s222 = int_to_ptr.vmem [resolvable:$true] %s221
          %227 = dma.hbm_to_vmem [thread:$0]  %s1, 512, %s222, [#allocation6], 64, 64, 4
        $region16: #{tpu_custom_call.1} parent=11 // pred_fallthru
          _
        // Predicated region
        $region17: #{tpu_custom_call.1} parent=11 // pred_check
          %p228 = pneg %p90
        $region18: #{tpu_custom_call.1} parent=11 // pred_check_branch
          %230 = sbr.rel (%p228) target = $region20
        $region19: #{tpu_custom_call.1} parent=11 // pred_region
          %s232 = ssub.s32 16, 16
          %233 = vsyncadd [#allocation6], %s232
          %s235 = sshll.u32 [#allocation7], 4
          %s236 = int_to_ptr.vmem [resolvable:$true] %s235
          %238 = dma.hbm_to_vmem [thread:$0]  %s2, 16, %s236, [#allocation6]
        $region20: #{tpu_custom_call.1} parent=11 // pred_fallthru
          _
        // Predicated region
        $region21: #{tpu_custom_call.1} parent=11 // pred_check
          %p239 = pneg %p111
        $region22: #{tpu_custom_call.1} parent=11 // pred_check_branch
          %241 = sbr.rel (%p239) target = $region24
        $region23: #{tpu_custom_call.1} parent=11 // pred_region
          %s243 = ssub.s32 512, 512
          %244 = vsyncadd [#allocation9], %s243
          %s245 = sshll.u32 [#allocation8], 4
          %s246 = int_to_ptr.vmem [resolvable:$true] %s245
          %251 = dma.hbm_to_vmem [thread:$0]  %s3, 512, %s246, [#allocation9], 64, 64, 4
        $region24: #{tpu_custom_call.1} parent=11 // pred_fallthru
          _
        // Predicated region
        $region25: #{tpu_custom_call.1} parent=11 // pred_check
          %p252 = pneg %p132
        $region26: #{tpu_custom_call.1} parent=11 // pred_check_branch
          %254 = sbr.rel (%p252) target = $region28
        $region27: #{tpu_custom_call.1} parent=11 // pred_region
          %s256 = ssub.s32 16, 16
          %257 = vsyncadd [#allocation9], %s256
          %s259 = sshll.u32 [#allocation10], 4
          %s260 = int_to_ptr.vmem [resolvable:$true] %s259
          %262 = dma.hbm_to_vmem [thread:$0]  %s4, 16, %s260, [#allocation9]
        $region28: #{tpu_custom_call.1} parent=11 // pred_fallthru
          _
        // Predicated region
        $region29: #{tpu_custom_call.1} parent=11 // pred_check
          %p263 = pneg %p153
        $region30: #{tpu_custom_call.1} parent=11 // pred_check_branch
          %265 = sbr.rel (%p263) target = $region32
        $region31: #{tpu_custom_call.1} parent=11 // pred_region
          %s267 = ssub.s32 256, 256
          %268 = vsyncadd [#allocation12], %s267
          %s269 = sshll.u32 [#allocation11], 4
          %s270 = int_to_ptr.vmem [resolvable:$true] %s269
          %275 = dma.hbm_to_vmem [thread:$0]  %s5, 256, %s270, [#allocation12], 64, 64, 4
        $region32: #{tpu_custom_call.1} parent=11 // pred_fallthru
          _
        // Predicated region
        $region33: #{tpu_custom_call.1} parent=11 // pred_check
          %p276 = pneg %p174
        $region34: #{tpu_custom_call.1} parent=11 // pred_check_branch
          %278 = sbr.rel (%p276) target = $region36
        $region35: #{tpu_custom_call.1} parent=11 // pred_region
          %s280 = ssub.s32 16, 16
          %281 = vsyncadd [#allocation12], %s280
          %s283 = sshll.u32 [#allocation13], 4
          %s284 = int_to_ptr.vmem [resolvable:$true] %s283
          %286 = dma.hbm_to_vmem [thread:$0]  %s6, 16, %s284, [#allocation12]
        $region36: #{tpu_custom_call.1} parent=11 // pred_fallthru
          _
      $region12: #{tpu_custom_call.1} parent=5 // pred_fallthru
        _
      %p287 = scmp.lt.s32.totalorder %s22, 2
      // Predicated region
      $region37: #{tpu_custom_call.1} parent=5 // pred_check
        %p288 = pneg %p287
      $region38: #{tpu_custom_call.1} parent=5 // pred_check_branch
        %290 = sbr.rel (%p288) target = $region40
      $region39: #{tpu_custom_call.1} parent=5 // pred_region
        // Predicated region
        $region41: #{tpu_custom_call.1} parent=39 // pred_check
          %p291 = pneg %p42
        $region42: #{tpu_custom_call.1} parent=39 // pred_check_branch
          %293 = sbr.rel (%p291) target = $region44
        $region43: #{tpu_custom_call.1} parent=39 // pred_region
          %s294 = sand.u32 %s32, 1
          %s295 = scalar_lea.sflag [#allocation3], %s294
          %s296 = sand.u32 %s32, 1
          %s297 = smul.addr %s296, 128
          %s298 = scalar_lea.vmem [#allocation2], %s297
          %s299 = smul.u32 16, %s22
          %s301 = ssub.s32 2048, 2048
          %302 = vsyncadd %s295, %s301
          %s303 = smul.addr %s299, 128
          %s304 = scalar_lea.hbm %s0, %s303
          %s305 = sshll.u32 %s298, 4
          %s306 = int_to_ptr.vmem [resolvable:$true] %s305
          %311 = dma.hbm_to_vmem [thread:$0]  %s304, 2048, %s306, %s295, 128, 128, 8
        $region44: #{tpu_custom_call.1} parent=39 // pred_fallthru
          _
      $region40: #{tpu_custom_call.1} parent=5 // pred_fallthru
        _
      %p312 = scmp.le.s32.totalorder 1, %s22
      %p313 = scmp.lt.s32.totalorder %s22, 3
      %p314 = pnand %p312, %p313
      %p315 = pneg %p314
      // Predicated region
      $region45: #{tpu_custom_call.1} parent=5 // pred_check
        _
      $region46: #{tpu_custom_call.1} parent=5 // pred_check_branch
        %317 = sbr.rel (%p314) target = $region48
      $region47: #{tpu_custom_call.1} parent=5 // pred_region
        %s318 = ssub.s32 %s22, 1
        %s319 = sand.u32 %s35, 1
        %s320 = scalar_lea.sflag [#allocation3], %s319
        %s321 = sand.u32 %s35, 1
        %s322 = smul.addr %s321, 128
        %s323 = scalar_lea.vmem [#allocation2], %s322
        // Predicated region
        $region49: #{tpu_custom_call.1} parent=47 // pred_check
          %p324 = pneg %p48
        $region50: #{tpu_custom_call.1} parent=47 // pred_check_branch
          %326 = sbr.rel (%p324) target = $region52
        $region51: #{tpu_custom_call.1} parent=47 // pred_region
          %327 = dma.done %s320, 2048
        $region52: #{tpu_custom_call.1} parent=47 // pred_fallthru
          _
        // Predicated region
        $region53: #{tpu_custom_call.1} parent=47 // pred_check
          %p328 = pneg %p69
        $region54: #{tpu_custom_call.1} parent=47 // pred_check_branch
          %330 = sbr.rel (%p328) target = $region56
        $region55: #{tpu_custom_call.1} parent=47 // pred_region
          %331 = dma.done [#allocation6], 512
        $region56: #{tpu_custom_call.1} parent=47 // pred_fallthru
          _
        // Predicated region
        $region57: #{tpu_custom_call.1} parent=47 // pred_check
          %p332 = pneg %p90
        $region58: #{tpu_custom_call.1} parent=47 // pred_check_branch
          %334 = sbr.rel (%p332) target = $region60
        $region59: #{tpu_custom_call.1} parent=47 // pred_region
          %335 = dma.done [#allocation6], 16
        $region60: #{tpu_custom_call.1} parent=47 // pred_fallthru
          _
        // Predicated region
        $region61: #{tpu_custom_call.1} parent=47 // pred_check
          %p336 = pneg %p111
        $region62: #{tpu_custom_call.1} parent=47 // pred_check_branch
          %338 = sbr.rel (%p336) target = $region64
        $region63: #{tpu_custom_call.1} parent=47 // pred_region
          %339 = dma.done [#allocation9], 512
        $region64: #{tpu_custom_call.1} parent=47 // pred_fallthru
          _
        // Predicated region
        $region65: #{tpu_custom_call.1} parent=47 // pred_check
          %p340 = pneg %p132
        $region66: #{tpu_custom_call.1} parent=47 // pred_check_branch
          %342 = sbr.rel (%p340) target = $region68
        $region67: #{tpu_custom_call.1} parent=47 // pred_region
          %343 = dma.done [#allocation9], 16
        $region68: #{tpu_custom_call.1} parent=47 // pred_fallthru
          _
        // Predicated region
        $region69: #{tpu_custom_call.1} parent=47 // pred_check
          %p344 = pneg %p153
        $region70: #{tpu_custom_call.1} parent=47 // pred_check_branch
          %346 = sbr.rel (%p344) target = $region72
        $region71: #{tpu_custom_call.1} parent=47 // pred_region
          %347 = dma.done [#allocation12], 256
        $region72: #{tpu_custom_call.1} parent=47 // pred_fallthru
          _
        // Predicated region
        $region73: #{tpu_custom_call.1} parent=47 // pred_check
          %p348 = pneg %p174
        $region74: #{tpu_custom_call.1} parent=47 // pred_check_branch
          %350 = sbr.rel (%p348) target = $region76
        $region75: #{tpu_custom_call.1} parent=47 // pred_region
          %351 = dma.done [#allocation12], 16
        $region76: #{tpu_custom_call.1} parent=47 // pred_fallthru
          _
        %s352 = sand.u32 %s35, 1
        %s353 = scalar_lea.sflag [#allocation3], %s352
        %s354 = sand.u32 %s35, 1
        %s355 = smul.addr %s354, 128
        %s356 = scalar_lea.vmem [#allocation2], %s355
        %p357 = pneg %p48
        %p358 = pneg %p45
        %p359 = pneg %p69
        %p360 = pneg %p66
        %p361 = pneg %p90
        %p362 = pneg %p87
        %p363 = pneg %p111
        %p364 = pneg %p108
        %p365 = pneg %p132
        %p366 = pneg %p129
        %p367 = pneg %p153
        %p368 = pneg %p150
        %p369 = pneg %p174
        %p370 = pneg %p171
        %p371 = pneg %p200
        %p372 = pneg %p197
        %s373 = sand.u32 %s187, 1
        %s374 = scalar_lea.sflag [#allocation4], %s373
        %s375 = sand.u32 %s187, 1
        %s376 = smul.addr %s375, 128
        %s377 = scalar_lea.vmem [#allocation14], %s376
        %s378 = smul.u32 16, %s27
        %s379 = smul.u32 16, %s27
        %v381 = vld [vmem:[%s323] sm:$0xff]
        %v382 = vld [vmem:[%s323 + $0x8] sm:$0xff]
        %v383 = vld [vmem:[%s323 + $0x10] sm:$0xff]
        %v384 = vld [vmem:[%s323 + $0x18] sm:$0xff]
        %v385 = vld [vmem:[%s323 + $0x20] sm:$0xff]
        %v386 = vld [vmem:[%s323 + $0x28] sm:$0xff]
        %v387 = vld [vmem:[%s323 + $0x30] sm:$0xff]
        %v388 = vld [vmem:[%s323 + $0x38] sm:$0xff]
        %v389 = vld [vmem:[%s323 + $0x40] sm:$0xff]
        %v390 = vld [vmem:[%s323 + $0x48] sm:$0xff]
        %v391 = vld [vmem:[%s323 + $0x50] sm:$0xff]
        %v392 = vld [vmem:[%s323 + $0x58] sm:$0xff]
        %v393 = vld [vmem:[%s323 + $0x60] sm:$0xff]
        %v394 = vld [vmem:[%s323 + $0x68] sm:$0xff]
        %v395 = vld [vmem:[%s323 + $0x70] sm:$0xff]
        %v396 = vld [vmem:[%s323 + $0x78] sm:$0xff]
        %v397 = vpack.c.bf16 %v382, %v381
        %v398 = vpack.c.bf16 %v384, %v383
        %v399 = vpack.c.bf16 %v386, %v385
        %v400 = vpack.c.bf16 %v388, %v387
        %v401 = vpack.c.bf16 %v390, %v389
        %v402 = vpack.c.bf16 %v392, %v391
        %v403 = vpack.c.bf16 %v394, %v393
        %v404 = vpack.c.bf16 %v396, %v395
        %v405 = vld [vmem:[#allocation5] sm:$0xf]
        %v406 = vld [vmem:[#allocation5 + $0x4] sm:$0xf]
        %v407 = vld [vmem:[#allocation5 + $0x8] sm:$0xf]
        %v408 = vld [vmem:[#allocation5 + $0xc] sm:$0xf]
        %v409 = vld [vmem:[#allocation5 + $0x10] sm:$0xf]
        %v410 = vld [vmem:[#allocation5 + $0x14] sm:$0xf]
        %v411 = vld [vmem:[#allocation5 + $0x18] sm:$0xf]
        %v412 = vld [vmem:[#allocation5 + $0x1c] sm:$0xf]
        %v413 = vld [vmem:[#allocation7] sm:$0x1]
        %v415 = vlaneseq
        %v416 = vshrl.u32 %v415, 7
        %v417 = vsub.s32 0, %v416
        %v418 = vrot.slane %v413, %v417
        %v428 = vunpack.c.l.b16 %v405
        %v429 = vunpack.c.l.b16 %v406
        %v430 = vunpack.c.l.b16 %v407
        %v431 = vunpack.c.l.b16 %v408
        %v432 = vunpack.c.l.b16 %v409
        %v433 = vunpack.c.l.b16 %v410
        %v434 = vunpack.c.l.b16 %v411
        %v435 = vunpack.c.l.b16 %v412
        %v436 = vpack.c.b16 %v429, %v428
        %v437 = vpack.c.b16 %v431, %v430
        %v438 = vpack.c.b16 %v433, %v432
        %v439 = vpack.c.b16 %v435, %v434
        %vm444 = vcmask 523264
        %v446 = vsel %vm444, %v397, 0
        %v449 = vsel %vm444, %v398, 0
        %v452 = vsel %vm444, %v399, 0
        %v455 = vsel %vm444, %v400, 0
        %v458 = vsel %vm444, %v401, 0
        %v461 = vsel %vm444, %v402, 0
        %v464 = vsel %vm444, %v403, 0
        %v467 = vsel %vm444, %v404, 0
        %469 = vmatprep.subr.bf16.mxu0 0
        %470 = vmatpush1.bf16.msra.mxu0 %v436
        %471 = vmatprep.subr.bf16.mxu0 0
        %472 = vmatpush1.bf16.msra.mxu0 %v437
        %473 = vmatprep.subr.bf16.mxu0 0
        %474 = vmatpush1.bf16.msra.mxu0 %v438
        %475 = vmatprep.subr.bf16.mxu0 0
        %476 = vmatpush1.bf16.msra.mxu0 %v439
        %477 = vmatprep.subr.bf16.mxu0 0
        %478 = vmatpush1.bf16.msra.mxu0 0
        %479 = vmatprep.subr.bf16.mxu0 0
        %480 = vmatpush1.bf16.msra.mxu0 0
        %481 = vmatprep.subr.bf16.mxu0 0
        %482 = vmatpush1.bf16.msra.mxu0 0
        %483 = vmatprep.subr.bf16.mxu0 0
        %484 = vmatpush1.bf16.msra.mxu0 0
        %485 = vmatprep.subr.bf16.mxu0 0
        %486 = vmatpush1.bf16.msra.mxu0 0
        %487 = vmatprep.subr.bf16.mxu0 0
        %488 = vmatpush1.bf16.msra.mxu0 0
        %489 = vmatprep.subr.bf16.mxu0 0
        %490 = vmatpush1.bf16.msra.mxu0 0
        %491 = vmatprep.subr.bf16.mxu0 0
        %492 = vmatpush1.bf16.msra.mxu0 0
        %493 = vmatprep.subr.bf16.mxu0 0
        %494 = vmatpush1.bf16.msra.mxu0 0
        %495 = vmatprep.subr.bf16.mxu0 0
        %496 = vmatpush1.bf16.msra.mxu0 0
        %497 = vmatprep.subr.bf16.mxu0 0
        %498 = vmatpush1.bf16.msra.mxu0 0
        %499 = vmatprep.subr.bf16.mxu0 0
        %500 = vmatpush1.bf16.msra.mxu0 0
        %501 = vmatprep.mubr.bf16.mxu0 0
        %502 = vmatmul.mubr.bf16.gmra.mrb[0].mxu0 %v446
        %v503 = vpop.f32.mrb[0].mxu0
        %v504 = vadd.f32 %v418, %v503
        %v505 = vpop.f32.mrb[0].mxu0
        %v506 = vpop.f32.mrb[0].mxu0
        %v507 = vadd.f32 %v418, %v506
        %v508 = vpop.f32.mrb[0].mxu0
        %509 = vmatprep.mubr.bf16.mxu0 0
        %510 = vmatmul.mubr.bf16.gmra.mrb[0].mxu0 %v449
        %v511 = vpop.f32.mrb[0].mxu0
        %v512 = vadd.f32 %v418, %v511
        %v513 = vpop.f32.mrb[0].mxu0
        %v514 = vpop.f32.mrb[0].mxu0
        %v515 = vadd.f32 %v418, %v514
        %v516 = vpop.f32.mrb[0].mxu0
        %517 = vmatprep.mubr.bf16.mxu0 0
        %518 = vmatmul.mubr.bf16.gmra.mrb[0].mxu0 %v452
        %v519 = vpop.f32.mrb[0].mxu0
        %v520 = vadd.f32 %v418, %v519
        %v521 = vpop.f32.mrb[0].mxu0
        %v522 = vpop.f32.mrb[0].mxu0
        %v523 = vadd.f32 %v418, %v522
        %v524 = vpop.f32.mrb[0].mxu0
        %525 = vmatprep.mubr.bf16.mxu0 0
        %526 = vmatmul.mubr.bf16.gmra.mrb[0].mxu0 %v455
        %v527 = vpop.f32.mrb[0].mxu0
        %v528 = vadd.f32 %v418, %v527
        %v529 = vpop.f32.mrb[0].mxu0
        %v530 = vpop.f32.mrb[0].mxu0
        %v531 = vadd.f32 %v418, %v530
        %v532 = vpop.f32.mrb[0].mxu0
        %533 = vmatprep.mubr.bf16.mxu0 0
        %534 = vmatmul.mubr.bf16.gmra.mrb[0].mxu0 %v458
        %v535 = vpop.f32.mrb[0].mxu0
        %v536 = vadd.f32 %v418, %v535
        %v537 = vpop.f32.mrb[0].mxu0
        %v538 = vpop.f32.mrb[0].mxu0
        %v539 = vadd.f32 %v418, %v538
        %v540 = vpop.f32.mrb[0].mxu0
        %541 = vmatprep.mubr.bf16.mxu0 0
        %542 = vmatmul.mubr.bf16.gmra.mrb[0].mxu0 %v461
        %v543 = vpop.f32.mrb[0].mxu0
        %v544 = vadd.f32 %v418, %v543
        %v545 = vpop.f32.mrb[0].mxu0
        %v546 = vpop.f32.mrb[0].mxu0
        %v547 = vadd.f32 %v418, %v546
        %v548 = vpop.f32.mrb[0].mxu0
        %549 = vmatprep.mubr.bf16.mxu0 0
        %550 = vmatmul.mubr.bf16.gmra.mrb[0].mxu0 %v464
        %v551 = vpop.f32.mrb[0].mxu0
        %v552 = vadd.f32 %v418, %v551
        %v553 = vpop.f32.mrb[0].mxu0
        %v554 = vpop.f32.mrb[0].mxu0
        %v555 = vadd.f32 %v418, %v554
        %v556 = vpop.f32.mrb[0].mxu0
        %557 = vmatprep.mubr.bf16.mxu0 0
        %558 = vmatmul.mubr.bf16.gmra.mrb[0].mxu0 %v467
        %v559 = vpop.f32.mrb[0].mxu0
        %v560 = vadd.f32 %v418, %v559
        %v561 = vpop.f32.mrb[0].mxu0
        %v562 = vpop.f32.mrb[0].mxu0
        %v563 = vadd.f32 %v418, %v562
        %v564 = vpop.f32.mrb[0].mxu0
        %565 = vdwg.mxu0
        %v566 = vpack.c.bf16 %v507, %v504
        %v567 = vpack.c.bf16 %v515, %v512
        %v568 = vpack.c.bf16 %v523, %v520
        %v569 = vpack.c.bf16 %v531, %v528
        %v570 = vpack.c.bf16 %v539, %v536
        %v571 = vpack.c.bf16 %v547, %v544
        %v572 = vpack.c.bf16 %v555, %v552
        %v573 = vpack.c.bf16 %v563, %v560
        %v574 = vld [vmem:[#allocation8] sm:$0xf]
        %v575 = vld [vmem:[#allocation8 + $0x4] sm:$0xf]
        %v576 = vld [vmem:[#allocation8 + $0x8] sm:$0xf]
        %v577 = vld [vmem:[#allocation8 + $0xc] sm:$0xf]
        %v578 = vld [vmem:[#allocation8 + $0x10] sm:$0xf]
        %v579 = vld [vmem:[#allocation8 + $0x14] sm:$0xf]
        %v580 = vld [vmem:[#allocation8 + $0x18] sm:$0xf]
        %v581 = vld [vmem:[#allocation8 + $0x1c] sm:$0xf]
        %v582 = vld [vmem:[#allocation10] sm:$0x1]
        %v584 = vlaneseq
        %v585 = vshrl.u32 %v584, 7
        %v586 = vsub.s32 0, %v585
        %v587 = vrot.slane %v582, %v586
        %v597 = vunpack.c.l.b16 %v574
        %v598 = vunpack.c.l.b16 %v575
        %v599 = vunpack.c.l.b16 %v576
        %v600 = vunpack.c.l.b16 %v577
        %v601 = vunpack.c.l.b16 %v578
        %v602 = vunpack.c.l.b16 %v579
        %v603 = vunpack.c.l.b16 %v580
        %v604 = vunpack.c.l.b16 %v581
        %v605 = vpack.c.b16 %v598, %v597
        %v606 = vpack.c.b16 %v600, %v599
        %v607 = vpack.c.b16 %v602, %v601
        %v608 = vpack.c.b16 %v604, %v603
        %v614 = vsel %vm444, %v566, 0
        %v617 = vsel %vm444, %v567, 0
        %v620 = vsel %vm444, %v568, 0
        %v623 = vsel %vm444, %v569, 0
        %v626 = vsel %vm444, %v570, 0
        %v629 = vsel %vm444, %v571, 0
        %v632 = vsel %vm444, %v572, 0
        %v635 = vsel %vm444, %v573, 0
        %637 = vmatprep.subr.bf16.mxu0 0
        %638 = vmatpush1.bf16.msra.mxu0 %v605
        %639 = vmatprep.subr.bf16.mxu0 0
        %640 = vmatpush1.bf16.msra.mxu0 %v606
        %641 = vmatprep.subr.bf16.mxu0 0
        %642 = vmatpush1.bf16.msra.mxu0 %v607
        %643 = vmatprep.subr.bf16.mxu0 0
        %644 = vmatpush1.bf16.msra.mxu0 %v608
        %645 = vmatprep.subr.bf16.mxu0 0
        %646 = vmatpush1.bf16.msra.mxu0 0
        %647 = vmatprep.subr.bf16.mxu0 0
        %648 = vmatpush1.bf16.msra.mxu0 0
        %649 = vmatprep.subr.bf16.mxu0 0
        %650 = vmatpush1.bf16.msra.mxu0 0
        %651 = vmatprep.subr.bf16.mxu0 0
        %652 = vmatpush1.bf16.msra.mxu0 0
        %653 = vmatprep.subr.bf16.mxu0 0
        %654 = vmatpush1.bf16.msra.mxu0 0
        %655 = vmatprep.subr.bf16.mxu0 0
        %656 = vmatpush1.bf16.msra.mxu0 0
        %657 = vmatprep.subr.bf16.mxu0 0
        %658 = vmatpush1.bf16.msra.mxu0 0
        %659 = vmatprep.subr.bf16.mxu0 0
        %660 = vmatpush1.bf16.msra.mxu0 0
        %661 = vmatprep.subr.bf16.mxu0 0
        %662 = vmatpush1.bf16.msra.mxu0 0
        %663 = vmatprep.subr.bf16.mxu0 0
        %664 = vmatpush1.bf16.msra.mxu0 0
        %665 = vmatprep.subr.bf16.mxu0 0
        %666 = vmatpush1.bf16.msra.mxu0 0
        %667 = vmatprep.subr.bf16.mxu0 0
        %668 = vmatpush1.bf16.msra.mxu0 0
        %669 = vmatprep.mubr.bf16.mxu0 0
        %670 = vmatmul.mubr.bf16.gmra.mrb[0].mxu0 %v614
        %v671 = vpop.f32.mrb[0].mxu0
        %v672 = vadd.f32 %v587, %v671
        %v673 = vpop.f32.mrb[0].mxu0
        %v674 = vpop.f32.mrb[0].mxu0
        %v675 = vadd.f32 %v587, %v674
        %v676 = vpop.f32.mrb[0].mxu0
        %677 = vmatprep.mubr.bf16.mxu0 0
        %678 = vmatmul.mubr.bf16.gmra.mrb[0].mxu0 %v617
        %v679 = vpop.f32.mrb[0].mxu0
        %v680 = vadd.f32 %v587, %v679
        %v681 = vpop.f32.mrb[0].mxu0
        %v682 = vpop.f32.mrb[0].mxu0
        %v683 = vadd.f32 %v587, %v682
        %v684 = vpop.f32.mrb[0].mxu0
        %685 = vmatprep.mubr.bf16.mxu0 0
        %686 = vmatmul.mubr.bf16.gmra.mrb[0].mxu0 %v620
        %v687 = vpop.f32.mrb[0].mxu0
        %v688 = vadd.f32 %v587, %v687
        %v689 = vpop.f32.mrb[0].mxu0
        %v690 = vpop.f32.mrb[0].mxu0
        %v691 = vadd.f32 %v587, %v690
        %v692 = vpop.f32.mrb[0].mxu0
        %693 = vmatprep.mubr.bf16.mxu0 0
        %694 = vmatmul.mubr.bf16.gmra.mrb[0].mxu0 %v623
        %v695 = vpop.f32.mrb[0].mxu0
        %v696 = vadd.f32 %v587, %v695
        %v697 = vpop.f32.mrb[0].mxu0
        %v698 = vpop.f32.mrb[0].mxu0
        %v699 = vadd.f32 %v587, %v698
        %v700 = vpop.f32.mrb[0].mxu0
        %701 = vmatprep.mubr.bf16.mxu0 0
        %702 = vmatmul.mubr.bf16.gmra.mrb[0].mxu0 %v626
        %v703 = vpop.f32.mrb[0].mxu0
        %v704 = vadd.f32 %v587, %v703
        %v705 = vpop.f32.mrb[0].mxu0
        %v706 = vpop.f32.mrb[0].mxu0
        %v707 = vadd.f32 %v587, %v706
        %v708 = vpop.f32.mrb[0].mxu0
        %709 = vmatprep.mubr.bf16.mxu0 0
        %710 = vmatmul.mubr.bf16.gmra.mrb[0].mxu0 %v629
        %v711 = vpop.f32.mrb[0].mxu0
        %v712 = vadd.f32 %v587, %v711
        %v713 = vpop.f32.mrb[0].mxu0
        %v714 = vpop.f32.mrb[0].mxu0
        %v715 = vadd.f32 %v587, %v714
        %v716 = vpop.f32.mrb[0].mxu0
        %717 = vmatprep.mubr.bf16.mxu0 0
        %718 = vmatmul.mubr.bf16.gmra.mrb[0].mxu0 %v632
        %v719 = vpop.f32.mrb[0].mxu0
        %v720 = vadd.f32 %v587, %v719
        %v721 = vpop.f32.mrb[0].mxu0
        %v722 = vpop.f32.mrb[0].mxu0
        %v723 = vadd.f32 %v587, %v722
        %v724 = vpop.f32.mrb[0].mxu0
        %725 = vmatprep.mubr.bf16.mxu0 0
        %726 = vmatmul.mubr.bf16.gmra.mrb[0].mxu0 %v635
        %v727 = vpop.f32.mrb[0].mxu0
        %v728 = vadd.f32 %v587, %v727
        %v729 = vpop.f32.mrb[0].mxu0
        %v730 = vpop.f32.mrb[0].mxu0
        %v731 = vadd.f32 %v587, %v730
        %v732 = vpop.f32.mrb[0].mxu0
        %733 = vdwg.mxu0
        %v734 = vpack.c.bf16 %v675, %v672
        %v735 = vpack.c.bf16 %v683, %v680
        %v736 = vpack.c.bf16 %v691, %v688
        %v737 = vpack.c.bf16 %v699, %v696
        %v738 = vpack.c.bf16 %v707, %v704
        %v739 = vpack.c.bf16 %v715, %v712
        %v740 = vpack.c.bf16 %v723, %v720
        %v741 = vpack.c.bf16 %v731, %v728
        %v742 = vld [vmem:[#allocation11] sm:$0xf]
        %v743 = vld [vmem:[#allocation11 + $0x4] sm:$0xf]
        %v744 = vld [vmem:[#allocation11 + $0x8] sm:$0xf]
        %v745 = vld [vmem:[#allocation11 + $0xc] sm:$0xf]
        %v746 = vld [vmem:[#allocation13] sm:$0x1]
        %v748 = vlaneseq
        %v749 = vshrl.u32 %v748, 7
        %v750 = vsub.s32 0, %v749
        %v751 = vrot.slane %v746, %v750
        %v757 = vunpack.c.l.b16 %v742
        %v758 = vunpack.c.l.b16 %v743
        %v759 = vunpack.c.l.b16 %v744
        %v760 = vunpack.c.l.b16 %v745
        %v761 = vpack.c.b16 %v758, %v757
        %v762 = vpack.c.b16 %v760, %v759
        %vm765 = vcmask 261120
        %v767 = vsel %vm765, %v734, 0
        %v770 = vsel %vm765, %v735, 0
        %v773 = vsel %vm765, %v736, 0
        %v776 = vsel %vm765, %v737, 0
        %v779 = vsel %vm765, %v738, 0
        %v782 = vsel %vm765, %v739, 0
        %v785 = vsel %vm765, %v740, 0
        %v788 = vsel %vm765, %v741, 0
        %790 = vmatprep.subr.bf16.mxu0 0
        %791 = vmatpush1.bf16.msra.mxu0 %v761
        %792 = vmatprep.subr.bf16.mxu0 0
        %793 = vmatpush1.bf16.msra.mxu0 %v762
        %794 = vmatprep.subr.bf16.mxu0 0
        %795 = vmatpush1.bf16.msra.mxu0 0
        %796 = vmatprep.subr.bf16.mxu0 0
        %797 = vmatpush1.bf16.msra.mxu0 0
        %798 = vmatprep.subr.bf16.mxu0 0
        %799 = vmatpush1.bf16.msra.mxu0 0
        %800 = vmatprep.subr.bf16.mxu0 0
        %801 = vmatpush1.bf16.msra.mxu0 0
        %802 = vmatprep.subr.bf16.mxu0 0
        %803 = vmatpush1.bf16.msra.mxu0 0
        %804 = vmatprep.subr.bf16.mxu0 0
        %805 = vmatpush1.bf16.msra.mxu0 0
        %806 = vmatprep.subr.bf16.mxu0 0
        %807 = vmatpush1.bf16.msra.mxu0 0
        %808 = vmatprep.subr.bf16.mxu0 0
        %809 = vmatpush1.bf16.msra.mxu0 0
        %810 = vmatprep.subr.bf16.mxu0 0
        %811 = vmatpush1.bf16.msra.mxu0 0
        %812 = vmatprep.subr.bf16.mxu0 0
        %813 = vmatpush1.bf16.msra.mxu0 0
        %814 = vmatprep.subr.bf16.mxu0 0
        %815 = vmatpush1.bf16.msra.mxu0 0
        %816 = vmatprep.subr.bf16.mxu0 0
        %817 = vmatpush1.bf16.msra.mxu0 0
        %818 = vmatprep.subr.bf16.mxu0 0
        %819 = vmatpush1.bf16.msra.mxu0 0
        %820 = vmatprep.subr.bf16.mxu0 0
        %821 = vmatpush1.bf16.msra.mxu0 0
        %822 = vmatprep.mubr.bf16.mxu0 0
        %823 = vmatmul.mubr.bf16.gmra.mrb[0].mxu0 %v767
        %v824 = vpop.f32.mrb[0].mxu0
        %v825 = vadd.f32 %v751, %v824
        %v826 = vpop.f32.mrb[0].mxu0
        %v827 = vpop.f32.mrb[0].mxu0
        %v828 = vadd.f32 %v751, %v827
        %v829 = vpop.f32.mrb[0].mxu0
        %830 = vmatprep.mubr.bf16.mxu0 0
        %831 = vmatmul.mubr.bf16.gmra.mrb[0].mxu0 %v770
        %v832 = vpop.f32.mrb[0].mxu0
        %v833 = vadd.f32 %v751, %v832
        %v834 = vpop.f32.mrb[0].mxu0
        %v835 = vpop.f32.mrb[0].mxu0
        %v836 = vadd.f32 %v751, %v835
        %v837 = vpop.f32.mrb[0].mxu0
        %838 = vmatprep.mubr.bf16.mxu0 0
        %839 = vmatmul.mubr.bf16.gmra.mrb[0].mxu0 %v773
        %v840 = vpop.f32.mrb[0].mxu0
        %v841 = vadd.f32 %v751, %v840
        %v842 = vpop.f32.mrb[0].mxu0
        %v843 = vpop.f32.mrb[0].mxu0
        %v844 = vadd.f32 %v751, %v843
        %v845 = vpop.f32.mrb[0].mxu0
        %846 = vmatprep.mubr.bf16.mxu0 0
        %847 = vmatmul.mubr.bf16.gmra.mrb[0].mxu0 %v776
        %v848 = vpop.f32.mrb[0].mxu0
        %v849 = vadd.f32 %v751, %v848
        %v850 = vpop.f32.mrb[0].mxu0
        %v851 = vpop.f32.mrb[0].mxu0
        %v852 = vadd.f32 %v751, %v851
        %v853 = vpop.f32.mrb[0].mxu0
        %854 = vmatprep.mubr.bf16.mxu0 0
        %855 = vmatmul.mubr.bf16.gmra.mrb[0].mxu0 %v779
        %v856 = vpop.f32.mrb[0].mxu0
        %v857 = vadd.f32 %v751, %v856
        %v858 = vpop.f32.mrb[0].mxu0
        %v859 = vpop.f32.mrb[0].mxu0
        %v860 = vadd.f32 %v751, %v859
        %v861 = vpop.f32.mrb[0].mxu0
        %862 = vmatprep.mubr.bf16.mxu0 0
        %863 = vmatmul.mubr.bf16.gmra.mrb[0].mxu0 %v782
        %v864 = vpop.f32.mrb[0].mxu0
        %v865 = vadd.f32 %v751, %v864
        %v866 = vpop.f32.mrb[0].mxu0
        %v867 = vpop.f32.mrb[0].mxu0
        %v868 = vadd.f32 %v751, %v867
        %v869 = vpop.f32.mrb[0].mxu0
        %870 = vmatprep.mubr.bf16.mxu0 0
        %871 = vmatmul.mubr.bf16.gmra.mrb[0].mxu0 %v785
        %v872 = vpop.f32.mrb[0].mxu0
        %v873 = vadd.f32 %v751, %v872
        %v874 = vpop.f32.mrb[0].mxu0
        %v875 = vpop.f32.mrb[0].mxu0
        %v876 = vadd.f32 %v751, %v875
        %v877 = vpop.f32.mrb[0].mxu0
        %878 = vmatprep.mubr.bf16.mxu0 0
        %879 = vmatmul.mubr.bf16.gmra.mrb[0].mxu0 %v788
        %v880 = vpop.f32.mrb[0].mxu0
        %v881 = vadd.f32 %v751, %v880
        %v882 = vpop.f32.mrb[0].mxu0
        %v883 = vpop.f32.mrb[0].mxu0
        %v884 = vadd.f32 %v751, %v883
        %v885 = vpop.f32.mrb[0].mxu0
        %886 = vdwg.mxu0
        %vm887 = vcmask 64512
        %888 = vst.msk [vmem:[%s377] sm:$0xff] %vm887, %v825
        %889 = vst.msk [vmem:[%s377 + $0x8] sm:$0xff] %vm887, %v828
        %890 = vst.msk [vmem:[%s377 + $0x10] sm:$0xff] %vm887, %v833
        %891 = vst.msk [vmem:[%s377 + $0x18] sm:$0xff] %vm887, %v836
        %892 = vst.msk [vmem:[%s377 + $0x20] sm:$0xff] %vm887, %v841
        %893 = vst.msk [vmem:[%s377 + $0x28] sm:$0xff] %vm887, %v844
        %894 = vst.msk [vmem:[%s377 + $0x30] sm:$0xff] %vm887, %v849
        %895 = vst.msk [vmem:[%s377 + $0x38] sm:$0xff] %vm887, %v852
        %896 = vst.msk [vmem:[%s377 + $0x40] sm:$0xff] %vm887, %v857
        %897 = vst.msk [vmem:[%s377 + $0x48] sm:$0xff] %vm887, %v860
        %898 = vst.msk [vmem:[%s377 + $0x50] sm:$0xff] %vm887, %v865
        %899 = vst.msk [vmem:[%s377 + $0x58] sm:$0xff] %vm887, %v868
        %900 = vst.msk [vmem:[%s377 + $0x60] sm:$0xff] %vm887, %v873
        %901 = vst.msk [vmem:[%s377 + $0x68] sm:$0xff] %vm887, %v876
        %902 = vst.msk [vmem:[%s377 + $0x70] sm:$0xff] %vm887, %v881
        %903 = vst.msk [vmem:[%s377 + $0x78] sm:$0xff] %vm887, %v884
        %s904 = sand.u32 %s187, 1
        %s905 = scalar_lea.sflag [#allocation4], %s904
        %s906 = sand.u32 %s187, 1
        %s907 = smul.addr %s906, 128
        %s908 = scalar_lea.vmem [#allocation14], %s907
        // Predicated region
        $region77: #{tpu_custom_call.1} parent=47 // pred_check
          %p909 = pneg %p197
        $region78: #{tpu_custom_call.1} parent=47 // pred_check_branch
          %911 = sbr.rel (%p909) target = $region80
        $region79: #{tpu_custom_call.1} parent=47 // pred_region
          %s912 = smul.u32 16, %s27
          %s914 = ssub.s32 2048, 2048
          %915 = vsyncadd %s905, %s914
          %s916 = smul.addr %s912, 128
          %s917 = scalar_lea.hbm %s7, %s916
          %s918 = sshll.u32 %s908, 4
          %s919 = int_to_ptr.vmem [resolvable:$true] %s918
          %924 = dma.vmem_to_hbm [thread:$0]  %s919, 2048, %s917, %s905, 128, 128, 8
        $region80: #{tpu_custom_call.1} parent=47 // pred_fallthru
          _
      $region48: #{tpu_custom_call.1} parent=5 // pred_fallthru
        _
      %p925 = scmp.le.s32.totalorder 2, %s22
      // Predicated region
      $region81: #{tpu_custom_call.1} parent=5 // pred_check
        %p926 = pneg %p925
      $region82: #{tpu_custom_call.1} parent=5 // pred_check_branch
        %928 = sbr.rel (%p926) target = $region84
      $region83: #{tpu_custom_call.1} parent=5 // pred_region
        %s929 = ssub.s32 %s22, 2
        // Predicated region
        $region85: #{tpu_custom_call.1} parent=83 // pred_check
          %p930 = pneg %p203
        $region86: #{tpu_custom_call.1} parent=83 // pred_check_branch
          %932 = sbr.rel (%p930) target = $region88
        $region87: #{tpu_custom_call.1} parent=83 // pred_region
          %s933 = sand.u32 %s188, 1
          %s934 = scalar_lea.sflag [#allocation4], %s933
          %s935 = sand.u32 %s188, 1
          %s936 = smul.addr %s935, 128
          %s937 = scalar_lea.vmem [#allocation14], %s936
          %938 = dma.done %s934, 2048
        $region88: #{tpu_custom_call.1} parent=83 // pred_fallthru
          _
      $region84: #{tpu_custom_call.1} parent=5 // pred_fallthru
        _
    $region6: #{tpu_custom_call.1} parent=1 // loop_footer
      %s26 = sadd.s32 1, %s22
    $region7: #{tpu_custom_call.1} parent=1 // loop_footer_branch
      %21 = sbr.rel target = $region3
    $region8: #{tpu_custom_call.1} parent=1 // loop_exit
      _
    %939 = vsyncpa [#allocation3], 1
    %s940 = scalar_lea.sflag [#allocation3], 1
    %941 = vsyncpa %s940, 1
    %942 = vsyncpa [#allocation6], 1
    %943 = vsyncpa [#allocation9], 1
    %944 = vsyncpa [#allocation12], 1
    %945 = vsyncpa [#allocation4], 1
    %s946 = scalar_lea.sflag [#allocation4], 1
    %947 = vsyncpa %s946, 1

</llo_original>
